<compile_context>
chip_gen: v6e
topology: v6e:2x2x1
jax: 0.10.0
libtpu: 0.0.40
codegen_flags: <defaults>
</compile_context>

<pallas_src>
import numpy as np
import jax
import jax.numpy as jnp
from jax.experimental import pallas as pl
from jax.experimental.pallas import tpu as pltpu


# ----------------------------- Pallas kernel --------------------------------
def fnn_fused_kernel(idx_ref,
                     w1_ref, b1_ref,
                     w2_ref, b2_ref,
                     w3_ref, b3_ref,
                     w4_ref, b4_ref,
                     o_ref):
    tm, num_fields = idx_ref.shape
    tot_pad = w1_ref.shape[0]

    # Multi-hot encode the per-field global indices: M[b, c] = 1 iff c is one of
    # the row's field indices (field ranges are disjoint, so no collisions).
    lane = jax.lax.broadcasted_iota(jnp.int32, (tm, tot_pad), 1)
    m = jnp.zeros((tm, tot_pad), jnp.float32)
    for f in range(num_fields):                      # tiny static unroll (F=4)
        col = idx_ref[:, f:f + 1]                    # (TM, 1) int32
        m = m + (lane == col).astype(jnp.float32)

    # Fused embedding-gather + concat + Linear1 (folded into w1_ref), then MLP.
    h = jnp.dot(m.astype(jnp.bfloat16), w1_ref[...],
                preferred_element_type=jnp.float32) + b1_ref[...]
    h = jnp.maximum(h, 0.0)
    h = jnp.dot(h.astype(jnp.bfloat16), w2_ref[...],
                preferred_element_type=jnp.float32) + b2_ref[...]
    h = jnp.maximum(h, 0.0)
    h = jnp.dot(h.astype(jnp.bfloat16), w3_ref[...],
                preferred_element_type=jnp.float32) + b3_ref[...]
    h = jnp.maximum(h, 0.0)
    logits = jnp.dot(h.astype(jnp.bfloat16), w4_ref[...],
                     preferred_element_type=jnp.float32) + b4_ref[...]
    o_ref[...] = jax.nn.sigmoid(logits)              # (TM, 128); col 0 is real


# ------------------------------ wrapper --------------------------------------
def _round_up(x, m):
    return ((x + m - 1) // m) * m


def _pad_to(a, shape):
    return jnp.pad(a, [(0, s - d) for s, d in zip(shape, a.shape)])


def fnn_forward(x, params, field_dims):
    """x: (B, num_fields) int32 per-field categorical indices -> (B, 1) f32."""
    B, F = x.shape
    E = params["emb2"].shape[1]
    H = params["w1"].shape[1]                        # 128
    total = params["emb1"].shape[0]

    # Global indices (field offsets).
    offsets = jnp.asarray(np.concatenate(([0], np.cumsum(field_dims)[:-1])),
                          dtype=jnp.int32)
    gidx = x.astype(jnp.int32) + offsets[None, :]    # (B, F)

    # Fold emb1/emb2 + hstack + Linear1 into one (total, H) matrix.
    field_id = np.repeat(np.arange(F), field_dims)   # (total,)
    w1 = params["w1"]                                # (F*(1+E), H)
    w1_w = w1[:F, :][field_id]                       # (total, H)
    w1_v = w1[F:, :].reshape(F, E, H)[field_id]      # (total, E, H)
    w1_fold = params["emb1"] * w1_w + jnp.einsum("te,teh->th",
                                                 params["emb2"], w1_v)

    # Pad everything to lane-dense (multiples of 128) tiles; cast MXU operands
    # to bf16 (f32 accumulation inside the kernel).
    TOT_PAD = _round_up(max(total, 128), 128)
    w1p = _pad_to(w1_fold, (TOT_PAD, H)).astype(jnp.bfloat16)
    w2p = _pad_to(params["w2"], (H, H)).astype(jnp.bfloat16)
    w3p = _pad_to(params["w3"], (H, H)).astype(jnp.bfloat16)
    w4p = _pad_to(params["w4"], (H, H)).astype(jnp.bfloat16)
    b1p = _pad_to(params["b1"], (1, H)).astype(jnp.float32)
    b2p = _pad_to(params["b2"], (1, H)).astype(jnp.float32)
    b3p = _pad_to(params["b3"], (1, H)).astype(jnp.float32)
    b4p = _pad_to(params["b4"], (1, H)).astype(jnp.float32)

    # Batch tiling: biggest-reasonable tile, fits 64 MiB VMEM (v7x) comfortably.
    TM = 512 if B >= 512 else max(8, _round_up(B, 8))
    padded_B = _round_up(B, TM)
    gidx_p = _pad_to(gidx, (padded_B, F))            # pad rows with index 0
    num_tiles = padded_B // TM

    resident = lambda a: pl.BlockSpec(a.shape, lambda i: (0,) * a.ndim)
    weights = (w1p, b1p, w2p, b2p, w3p, b3p, w4p, b4p)

    cost = pl.CostEstimate(
        flops=2 * padded_B * (TOT_PAD * H + 3 * H * H),
        transcendentals=padded_B * H,
        bytes_accessed=(padded_B * F * 4 + padded_B * H * 4
                        + (TOT_PAD * H + 3 * H * H) * 2 + 4 * H * 4),
    )

    out = pl.pallas_call(
        fnn_fused_kernel,
        out_shape=jax.ShapeDtypeStruct((padded_B, H), jnp.float32),
        grid=(num_tiles,),
        in_specs=[pl.BlockSpec((TM, F), lambda i: (i, 0))]
                 + [resident(a) for a in weights],
        out_specs=pl.BlockSpec((TM, H), lambda i: (i, 0)),
        compiler_params=pltpu.CompilerParams(
            dimension_semantics=("parallel",)),
        cost_estimate=cost,
    )(gidx_p, *weights)

    return out[:B, :1]                               # (B, 1), matches PyTorch


# ------------------------------ Model params ---------------------------------
def init_params(key, field_dims, embed_dim=4):
    total = int(np.sum(field_dims))
    d0 = (embed_dim + 1) * len(field_dims)
    dims = [d0, 128, 64, 32, 1]
    keys = jax.random.split(key, 2 + 2 * (len(dims) - 1))

    def xavier(k, shape):
        fan_in, fan_out = shape[0], shape[1]
        limit = float(np.sqrt(6.0 / (fan_in + fan_out)))
        return jax.random.uniform(k, shape, jnp.float32, -limit, limit)

    params = {
        "emb1": xavier(keys[0], (total, 1)),
        "emb2": xavier(keys[1], (total, embed_dim)),
    }
    for i in range(len(dims) - 1):
        params[f"w{i + 1}"] = xavier(keys[2 + 2 * i], (dims[i], dims[i + 1]))
        params[f"b{i + 1}"] = jnp.zeros((1, dims[i + 1]), jnp.float32)
    # TODO(synk): reference torchfm-style MLP may include BatchNorm/Dropout per
    # hidden layer; treated here as eval-mode identity (fold BN into w/b if
    # exact parity with trained PyTorch weights is required).
    return params


# --------------------------------- main --------------------------------------
if __name__ == "__main__":
    field_dims = [10, 20, 30, 40]
    embed_dim = 4
    batch = 8

    key = jax.random.PRNGKey(0)
    pkey, xkey = jax.random.split(key)
    params = init_params(pkey, field_dims, embed_dim)

    # per-field categorical indices in [0, field_dims[i])
    xkeys = jax.random.split(xkey, len(field_dims))
    cols = [jax.random.randint(xkeys[i], (batch, 1), 0, field_dims[i],
                               dtype=jnp.int32)
            for i in range(len(field_dims))]
    x = jnp.concatenate(cols, axis=1)                # (B, F) int32

    out = fnn_forward(x, params, field_dims)
    out = jax.block_until_ready(out)
    assert out.shape == (batch, 1) and out.dtype == jnp.float32
    assert bool(jnp.all((out >= 0.0) & (out <= 1.0)))
    print("KERNEL_OK")
</pallas_src>

<mosaic_0001>
module attributes {stable_mosaic.version = 11 : i64} {
  func.func @fnn_fused_kernel(%arg0: i32, %arg1: memref<8x4xi32, #tpu.memory_space<vmem>>, %arg2: memref<128x128xbf16, #tpu.memory_space<vmem>>, %arg3: memref<1x128xf32, #tpu.memory_space<vmem>>, %arg4: memref<128x128xbf16, #tpu.memory_space<vmem>>, %arg5: memref<1x128xf32, #tpu.memory_space<vmem>>, %arg6: memref<128x128xbf16, #tpu.memory_space<vmem>>, %arg7: memref<1x128xf32, #tpu.memory_space<vmem>>, %arg8: memref<128x128xbf16, #tpu.memory_space<vmem>>, %arg9: memref<1x128xf32, #tpu.memory_space<vmem>>, %arg10: memref<8x128xf32, #tpu.memory_space<vmem>>) attributes {dimension_semantics = [#tpu.dimension_semantics<parallel>], iteration_bounds = array<i64: 1>, scalar_prefetch = 0 : i64, scratch_operands = 0 : i64, tpu.core_type = #tpu.core_type<tc>, window_params = [{transform_indices = @transform_0, window_bounds = array<i64: 8, 4>}, {pipeline_mode = #tpu.pipeline_mode<synchronous>, transform_indices = @transform_1, window_bounds = array<i64: 128, 128>}, {pipeline_mode = #tpu.pipeline_mode<synchronous>, transform_indices = @transform_2, window_bounds = array<i64: 1, 128>}, {pipeline_mode = #tpu.pipeline_mode<synchronous>, transform_indices = @transform_3, window_bounds = array<i64: 128, 128>}, {pipeline_mode = #tpu.pipeline_mode<synchronous>, transform_indices = @transform_4, window_bounds = array<i64: 1, 128>}, {pipeline_mode = #tpu.pipeline_mode<synchronous>, transform_indices = @transform_5, window_bounds = array<i64: 128, 128>}, {pipeline_mode = #tpu.pipeline_mode<synchronous>, transform_indices = @transform_6, window_bounds = array<i64: 1, 128>}, {pipeline_mode = #tpu.pipeline_mode<synchronous>, transform_indices = @transform_7, window_bounds = array<i64: 128, 128>}, {pipeline_mode = #tpu.pipeline_mode<synchronous>, transform_indices = @transform_8, window_bounds = array<i64: 1, 128>}, {transform_indices = @transform_9, window_bounds = array<i64: 8, 128>}]} {
    %0 = tpu.iota {dimensions = array<i32: 1>} : vector<8x128xi32>
    %cst = arith.constant 0.000000e+00 : f32
    %1 = vector.broadcast %cst : f32 to vector<8x128xf32>
    %c0 = arith.constant 0 : index
    %c0_0 = arith.constant 0 : index
    %2 = vector.load %arg1[%c0, %c0_0] : memref<8x4xi32, #tpu.memory_space<vmem>>, vector<8x1xi32>
    %3 = vector.broadcast %2 : vector<8x1xi32> to vector<8x128xi32>
    %4 = arith.cmpi eq, %0, %3 : vector<8x128xi32>
    %5 = arith.extui %4 : vector<8x128xi1> to vector<8x128xi32>
    %6 = arith.sitofp %5 : vector<8x128xi32> to vector<8x128xf32>
    %7 = arith.addf %1, %6 : vector<8x128xf32>
    %c0_1 = arith.constant 0 : index
    %c1 = arith.constant 1 : index
    %8 = vector.load %arg1[%c0_1, %c1] : memref<8x4xi32, #tpu.memory_space<vmem>>, vector<8x1xi32>
    %9 = vector.broadcast %8 : vector<8x1xi32> to vector<8x128xi32>
    %10 = arith.cmpi eq, %0, %9 : vector<8x128xi32>
    %11 = arith.extui %10 : vector<8x128xi1> to vector<8x128xi32>
    %12 = arith.sitofp %11 : vector<8x128xi32> to vector<8x128xf32>
    %13 = arith.addf %7, %12 : vector<8x128xf32>
    %c0_2 = arith.constant 0 : index
    %c2 = arith.constant 2 : index
    %14 = vector.load %arg1[%c0_2, %c2] : memref<8x4xi32, #tpu.memory_space<vmem>>, vector<8x1xi32>
    %15 = vector.broadcast %14 : vector<8x1xi32> to vector<8x128xi32>
    %16 = arith.cmpi eq, %0, %15 : vector<8x128xi32>
    %17 = arith.extui %16 : vector<8x128xi1> to vector<8x128xi32>
    %18 = arith.sitofp %17 : vector<8x128xi32> to vector<8x128xf32>
    %19 = arith.addf %13, %18 : vector<8x128xf32>
    %c0_3 = arith.constant 0 : index
    %c3 = arith.constant 3 : index
    %20 = vector.load %arg1[%c0_3, %c3] : memref<8x4xi32, #tpu.memory_space<vmem>>, vector<8x1xi32>
    %21 = vector.broadcast %20 : vector<8x1xi32> to vector<8x128xi32>
    %22 = arith.cmpi eq, %0, %21 : vector<8x128xi32>
    %23 = arith.extui %22 : vector<8x128xi1> to vector<8x128xi32>
    %24 = arith.sitofp %23 : vector<8x128xi32> to vector<8x128xf32>
    %25 = arith.addf %19, %24 : vector<8x128xf32>
    %26 = arith.truncf %25 : vector<8x128xf32> to vector<8x128xbf16>
    %c0_4 = arith.constant 0 : index
    %c0_5 = arith.constant 0 : index
    %27 = vector.load %arg2[%c0_4, %c0_5] : memref<128x128xbf16, #tpu.memory_space<vmem>>, vector<128x128xbf16>
    %cst_6 = arith.constant dense<0.000000e+00> : vector<8x128xf32>
    %28 = tpu.matmul %26, %27, %cst_6 {dimension_numbers = #tpu.dot_dimension_numbers<[1], [0], [0], [1], [0, 0, 1, 1], [], []>} : vector<8x128xbf16>, vector<128x128xbf16>, vector<8x128xf32> -> vector<8x128xf32>
    %c0_7 = arith.constant 0 : index
    %c0_8 = arith.constant 0 : index
    %29 = vector.load %arg3[%c0_7, %c0_8] : memref<1x128xf32, #tpu.memory_space<vmem>>, vector<1x128xf32>
    %30 = vector.broadcast %29 : vector<1x128xf32> to vector<8x128xf32>
    %31 = arith.addf %28, %30 : vector<8x128xf32>
    %cst_9 = arith.constant 0.000000e+00 : f32
    %32 = vector.broadcast %cst_9 : f32 to vector<8x128xf32>
    %33 = arith.maximumf %31, %32 : vector<8x128xf32>
    %34 = arith.truncf %33 : vector<8x128xf32> to vector<8x128xbf16>
    %c0_10 = arith.constant 0 : index
    %c0_11 = arith.constant 0 : index
    %35 = vector.load %arg4[%c0_10, %c0_11] : memref<128x128xbf16, #tpu.memory_space<vmem>>, vector<128x128xbf16>
    %cst_12 = arith.constant dense<0.000000e+00> : vector<8x128xf32>
    %36 = tpu.matmul %34, %35, %cst_12 {dimension_numbers = #tpu.dot_dimension_numbers<[1], [0], [0], [1], [0, 0, 1, 1], [], []>} : vector<8x128xbf16>, vector<128x128xbf16>, vector<8x128xf32> -> vector<8x128xf32>
    %c0_13 = arith.constant 0 : index
    %c0_14 = arith.constant 0 : index
    %37 = vector.load %arg5[%c0_13, %c0_14] : memref<1x128xf32, #tpu.memory_space<vmem>>, vector<1x128xf32>
    %38 = vector.broadcast %37 : vector<1x128xf32> to vector<8x128xf32>
    %39 = arith.addf %36, %38 : vector<8x128xf32>
    %cst_15 = arith.constant 0.000000e+00 : f32
    %40 = vector.broadcast %cst_15 : f32 to vector<8x128xf32>
    %41 = arith.maximumf %39, %40 : vector<8x128xf32>
    %42 = arith.truncf %41 : vector<8x128xf32> to vector<8x128xbf16>
    %c0_16 = arith.constant 0 : index
    %c0_17 = arith.constant 0 : index
    %43 = vector.load %arg6[%c0_16, %c0_17] : memref<128x128xbf16, #tpu.memory_space<vmem>>, vector<128x128xbf16>
    %cst_18 = arith.constant dense<0.000000e+00> : vector<8x128xf32>
    %44 = tpu.matmul %42, %43, %cst_18 {dimension_numbers = #tpu.dot_dimension_numbers<[1], [0], [0], [1], [0, 0, 1, 1], [], []>} : vector<8x128xbf16>, vector<128x128xbf16>, vector<8x128xf32> -> vector<8x128xf32>
    %c0_19 = arith.constant 0 : index
    %c0_20 = arith.constant 0 : index
    %45 = vector.load %arg7[%c0_19, %c0_20] : memref<1x128xf32, #tpu.memory_space<vmem>>, vector<1x128xf32>
    %46 = vector.broadcast %45 : vector<1x128xf32> to vector<8x128xf32>
    %47 = arith.addf %44, %46 : vector<8x128xf32>
    %cst_21 = arith.constant 0.000000e+00 : f32
    %48 = vector.broadcast %cst_21 : f32 to vector<8x128xf32>
    %49 = arith.maximumf %47, %48 : vector<8x128xf32>
    %50 = arith.truncf %49 : vector<8x128xf32> to vector<8x128xbf16>
    %c0_22 = arith.constant 0 : index
    %c0_23 = arith.constant 0 : index
    %51 = vector.load %arg8[%c0_22, %c0_23] : memref<128x128xbf16, #tpu.memory_space<vmem>>, vector<128x128xbf16>
    %cst_24 = arith.constant dense<0.000000e+00> : vector<8x128xf32>
    %52 = tpu.matmul %50, %51, %cst_24 {dimension_numbers = #tpu.dot_dimension_numbers<[1], [0], [0], [1], [0, 0, 1, 1], [], []>} : vector<8x128xbf16>, vector<128x128xbf16>, vector<8x128xf32> -> vector<8x128xf32>
    %c0_25 = arith.constant 0 : index
    %c0_26 = arith.constant 0 : index
    %53 = vector.load %arg9[%c0_25, %c0_26] : memref<1x128xf32, #tpu.memory_space<vmem>>, vector<1x128xf32>
    %54 = vector.broadcast %53 : vector<1x128xf32> to vector<8x128xf32>
    %55 = arith.addf %52, %54 : vector<8x128xf32>
    %56 = arith.negf %55 : vector<8x128xf32>
    %57 = math.exp %56 : vector<8x128xf32>
    %cst_27 = arith.constant 1.000000e+00 : f32
    %58 = vector.broadcast %cst_27 : f32 to vector<8x128xf32>
    %59 = arith.addf %58, %57 : vector<8x128xf32>
    %60 = arith.divf %58, %59 : vector<8x128xf32>
    %c0_28 = arith.constant 0 : index
    %c0_29 = arith.constant 0 : index
    %61 = vector.load %arg10[%c0_28, %c0_29] : memref<8x128xf32, #tpu.memory_space<vmem>>, vector<8x128xf32>
    tpu.vector_store %arg10[%c0_28, %c0_29], %60 {strides = array<i32>} : memref<8x128xf32, #tpu.memory_space<vmem>>, vector<8x128xf32>,
    return
  }
  func.func @transform_0(%arg0: i32) -> (i32, i32) {
    %c0_i32 = arith.constant 0 : i32
    %c0_i32_0 = arith.constant 0 : i32
    return %arg0, %c0_i32 : i32, i32
  }
  func.func @transform_1(%arg0: i32) -> (i32, i32) {
    %c0_i32 = arith.constant 0 : i32
    %c0_i32_0 = arith.constant 0 : i32
    %c0_i32_1 = arith.constant 0 : i32
    return %c0_i32, %c0_i32_0 : i32, i32
  }
  func.func @transform_2(%arg0: i32) -> (i32, i32) {
    %c0_i32 = arith.constant 0 : i32
    %c0_i32_0 = arith.constant 0 : i32
    %c0_i32_1 = arith.constant 0 : i32
    return %c0_i32, %c0_i32_0 : i32, i32
  }
  func.func @transform_3(%arg0: i32) -> (i32, i32) {
    %c0_i32 = arith.constant 0 : i32
    %c0_i32_0 = arith.constant 0 : i32
    %c0_i32_1 = arith.constant 0 : i32
    return %c0_i32, %c0_i32_0 : i32, i32
  }
  func.func @transform_4(%arg0: i32) -> (i32, i32) {
    %c0_i32 = arith.constant 0 : i32
    %c0_i32_0 = arith.constant 0 : i32
    %c0_i32_1 = arith.constant 0 : i32
    return %c0_i32, %c0_i32_0 : i32, i32
  }
  func.func @transform_5(%arg0: i32) -> (i32, i32) {
    %c0_i32 = arith.constant 0 : i32
    %c0_i32_0 = arith.constant 0 : i32
    %c0_i32_1 = arith.constant 0 : i32
    return %c0_i32, %c0_i32_0 : i32, i32
  }
  func.func @transform_6(%arg0: i32) -> (i32, i32) {
    %c0_i32 = arith.constant 0 : i32
    %c0_i32_0 = arith.constant 0 : i32
    %c0_i32_1 = arith.constant 0 : i32
    return %c0_i32, %c0_i32_0 : i32, i32
  }
  func.func @transform_7(%arg0: i32) -> (i32, i32) {
    %c0_i32 = arith.constant 0 : i32
    %c0_i32_0 = arith.constant 0 : i32
    %c0_i32_1 = arith.constant 0 : i32
    return %c0_i32, %c0_i32_0 : i32, i32
  }
  func.func @transform_8(%arg0: i32) -> (i32, i32) {
    %c0_i32 = arith.constant 0 : i32
    %c0_i32_0 = arith.constant 0 : i32
    %c0_i32_1 = arith.constant 0 : i32
    return %c0_i32, %c0_i32_0 : i32, i32
  }
  func.func @transform_9(%arg0: i32) -> (i32, i32) {
    %c0_i32 = arith.constant 0 : i32
    %c0_i32_0 = arith.constant 0 : i32
    return %arg0, %c0_i32 : i32, i32
  }
}

</mosaic_0001>

<llo_original>
// kernel: tpu_custom_call.1
$region0: #{tpu_custom_call.1}
  #allocation0 [shape = 'u32[]', space=smem, size = 0x4, offset = 0x4, fixed_abs, tag = 'smem constant byte address 0x4 - core index']
  #allocation1 [shape = 'u32[144,128]{1,0:T(1,128)}', space=vmem, size = 0x12000, scoped, tag = 'internal scratch']
  %s0 = inlined_call_operand.vmem [shape: s32[8,4], index: 0, kind: input, shape index: {}]
  %s1 = inlined_call_operand.hbm [shape: bf16[128,128], index: 1, kind: input, shape index: {}]
  %s2 = inlined_call_operand.vmem [shape: f32[1,128], index: 2, kind: input, shape index: {}]
  %s3 = inlined_call_operand.hbm [shape: bf16[128,128], index: 3, kind: input, shape index: {}]
  %s4 = inlined_call_operand.vmem [shape: f32[1,128], index: 4, kind: input, shape index: {}]
  %s5 = inlined_call_operand.hbm [shape: bf16[128,128], index: 5, kind: input, shape index: {}]
  %s6 = inlined_call_operand.vmem [shape: f32[1,128], index: 6, kind: input, shape index: {}]
  %s7 = inlined_call_operand.hbm [shape: bf16[128,128], index: 7, kind: input, shape index: {}]
  %s8 = inlined_call_operand.vmem [shape: f32[1,128], index: 8, kind: input, shape index: {}]
  %s9 = inlined_call_operand.hbm [shape: f32[8,128], index: 9, kind: output, shape index: {}]
  %s10 = sld [smem:[#allocation0]]
  $region62: #{tpu_custom_call.1} parent=0
    _
  %s12 = ssub.s32 1, %s10
  %s13 = scalar_select 0, %s12, %s10
  $region1: #{tpu_custom_call.1} parent=0
    #allocation2 [shape = 'u8[32768]{0}', space=vmem, size = 0x8000, scoped, tag = 'input window, operand 1, single buffered']
    #allocation3 [shape = 's32[1]{0}', space=sflag, size = 0x4, scoped, tag = 'scoped memory for tpu_custom_call.1']
    #allocation4 [shape = 's32[1]{0}', space=sflag, size = 0x4, scoped, tag = 'scoped memory for tpu_custom_call.1']
    #allocation5 [shape = 'u8[32768]{0}', space=vmem, size = 0x8000, scoped, tag = 'input window, operand 3, single buffered']
    #allocation6 [shape = 's32[1]{0}', space=sflag, size = 0x4, scoped, tag = 'scoped memory for tpu_custom_call.1']
    #allocation7 [shape = 'u8[32768]{0}', space=vmem, size = 0x8000, scoped, tag = 'input window, operand 5, single buffered']
    #allocation8 [shape = 'u8[32768]{0}', space=vmem, size = 0x8000, scoped, tag = 'input window, operand 7, single buffered']
    #allocation9 [shape = 's32[1]{0}', space=sflag, size = 0x4, scoped, tag = 'scoped memory for tpu_custom_call.1']
    #allocation10 [shape = 'u8[4096]{0}', space=vmem, size = 0x1000, scoped, tag = 'output window, operand 0, single buffered']
    %14 = vsyncpa [#allocation3], 0
    %15 = vsyncpa [#allocation6], 0
    %16 = vsyncpa [#allocation9], 0
    %17 = vsyncpa [#allocation4], 0
    // Predicated region
    $region2: #{tpu_custom_call.1} parent=1 // pred_check
      _
    $region3: #{tpu_custom_call.1} parent=1 // pred_check_branch
      %19 = sbr.rel (0) target = $region5
    $region4: #{tpu_custom_call.1} parent=1 // pred_region
      _
    $region5: #{tpu_custom_call.1} parent=1 // pred_fallthru
      _
    // Predicated region
    $region6: #{tpu_custom_call.1} parent=1 // pred_check
      _
    $region7: #{tpu_custom_call.1} parent=1 // pred_check_branch
      %21 = sbr.rel (0) target = $region9
    $region8: #{tpu_custom_call.1} parent=1 // pred_region
      %s23 = ssub.s32 1024, 1024
      %24 = vsyncadd [#allocation3], %s23
      %s25 = sshll.u32 [#allocation2], 4
      %s26 = int_to_ptr.vmem [resolvable:$true] %s25
      %31 = dma.hbm_to_vmem [thread:$0]  %s1, 1024, %s26, [#allocation3], 64, 64, 4
    $region9: #{tpu_custom_call.1} parent=1 // pred_fallthru
      _
    // Predicated region
    $region10: #{tpu_custom_call.1} parent=1 // pred_check
      _
    $region11: #{tpu_custom_call.1} parent=1 // pred_check_branch
      %33 = sbr.rel (0) target = $region13
    $region12: #{tpu_custom_call.1} parent=1 // pred_region
      _
    $region13: #{tpu_custom_call.1} parent=1 // pred_fallthru
      _
    // Predicated region
    $region14: #{tpu_custom_call.1} parent=1 // pred_check
      _
    $region15: #{tpu_custom_call.1} parent=1 // pred_check_branch
      %35 = sbr.rel (0) target = $region17
    $region16: #{tpu_custom_call.1} parent=1 // pred_region
      %s37 = ssub.s32 1024, 1024
      %38 = vsyncadd [#allocation6], %s37
      %s39 = sshll.u32 [#allocation5], 4
      %s40 = int_to_ptr.vmem [resolvable:$true] %s39
      %45 = dma.hbm_to_vmem [thread:$0]  %s3, 1024, %s40, [#allocation6], 64, 64, 4
    $region17: #{tpu_custom_call.1} parent=1 // pred_fallthru
      _
    // Predicated region
    $region18: #{tpu_custom_call.1} parent=1 // pred_check
      _
    $region19: #{tpu_custom_call.1} parent=1 // pred_check_branch
      %47 = sbr.rel (0) target = $region21
    $region20: #{tpu_custom_call.1} parent=1 // pred_region
      _
    $region21: #{tpu_custom_call.1} parent=1 // pred_fallthru
      _
    // Predicated region
    $region22: #{tpu_custom_call.1} parent=1 // pred_check
      _
    $region23: #{tpu_custom_call.1} parent=1 // pred_check_branch
      %49 = sbr.rel (0) target = $region25
    $region24: #{tpu_custom_call.1} parent=1 // pred_region
      %s51 = ssub.s32 1024, 1024
      %52 = vsyncadd [#allocation6], %s51
      %s53 = sshll.u32 [#allocation7], 4
      %s54 = int_to_ptr.vmem [resolvable:$true] %s53
      %59 = dma.hbm_to_vmem [thread:$0]  %s5, 1024, %s54, [#allocation6], 64, 64, 4
    $region25: #{tpu_custom_call.1} parent=1 // pred_fallthru
      _
    // Predicated region
    $region26: #{tpu_custom_call.1} parent=1 // pred_check
      _
    $region27: #{tpu_custom_call.1} parent=1 // pred_check_branch
      %61 = sbr.rel (0) target = $region29
    $region28: #{tpu_custom_call.1} parent=1 // pred_region
      _
    $region29: #{tpu_custom_call.1} parent=1 // pred_fallthru
      _
    // Predicated region
    $region30: #{tpu_custom_call.1} parent=1 // pred_check
      _
    $region31: #{tpu_custom_call.1} parent=1 // pred_check_branch
      %63 = sbr.rel (0) target = $region33
    $region32: #{tpu_custom_call.1} parent=1 // pred_region
      %s65 = ssub.s32 1024, 1024
      %66 = vsyncadd [#allocation9], %s65
      %s67 = sshll.u32 [#allocation8], 4
      %s68 = int_to_ptr.vmem [resolvable:$true] %s67
      %73 = dma.hbm_to_vmem [thread:$0]  %s7, 1024, %s68, [#allocation9], 64, 64, 4
    $region33: #{tpu_custom_call.1} parent=1 // pred_fallthru
      _
    // Predicated region
    $region34: #{tpu_custom_call.1} parent=1 // pred_check
      _
    $region35: #{tpu_custom_call.1} parent=1 // pred_check_branch
      %75 = sbr.rel (0) target = $region37
    $region36: #{tpu_custom_call.1} parent=1 // pred_region
      _
    $region37: #{tpu_custom_call.1} parent=1 // pred_fallthru
      _
    // Predicated region
    $region38: #{tpu_custom_call.1} parent=1 // pred_check
      _
    $region39: #{tpu_custom_call.1} parent=1 // pred_check_branch
      %77 = sbr.rel (0) target = $region41
    $region40: #{tpu_custom_call.1} parent=1 // pred_region
      %78 = dma.done [#allocation3], 1024
    $region41: #{tpu_custom_call.1} parent=1 // pred_fallthru
      _
    // Predicated region
    $region42: #{tpu_custom_call.1} parent=1 // pred_check
      _
    $region43: #{tpu_custom_call.1} parent=1 // pred_check_branch
      %80 = sbr.rel (0) target = $region45
    $region44: #{tpu_custom_call.1} parent=1 // pred_region
      %81 = dma.done [#allocation6], 1024
    $region45: #{tpu_custom_call.1} parent=1 // pred_fallthru
      _
    // Predicated region
    $region46: #{tpu_custom_call.1} parent=1 // pred_check
      _
    $region47: #{tpu_custom_call.1} parent=1 // pred_check_branch
      %83 = sbr.rel (0) target = $region49
    $region48: #{tpu_custom_call.1} parent=1 // pred_region
      %84 = dma.done [#allocation6], 1024
    $region49: #{tpu_custom_call.1} parent=1 // pred_fallthru
      _
    // Predicated region
    $region50: #{tpu_custom_call.1} parent=1 // pred_check
      _
    $region51: #{tpu_custom_call.1} parent=1 // pred_check_branch
      %86 = sbr.rel (0) target = $region53
    $region52: #{tpu_custom_call.1} parent=1 // pred_region
      %87 = dma.done [#allocation9], 1024
    $region53: #{tpu_custom_call.1} parent=1 // pred_fallthru
      _
    %v89 = vlaneseq
    %v90 = vand.u32 %v89, 127
    %v91 = vld [vmem:[%s0] sm:$0xff]
    %92 = vset.pattern.permute.xlu0 0
    %93 = vperm.xlu0 %92, %v91
    %v94 = vpop.permute.xlu0 %93
    %vm95 = vcmp.eq.s32.totalorder %v90, %v94
    %v96 = vsel %vm95, 1, 0
    %v97 = vcvt.s32.f32 %v96
    %v98 = vadd.f32 %v97, 0.0
    %99 = vset.pattern.permute.xlu0 1
    %100 = vperm.xlu0 %99, %v91
    %v101 = vpop.permute.xlu0 %100
    %vm102 = vcmp.eq.s32.totalorder %v90, %v101
    %v103 = vsel %vm102, 1, 0
    %v104 = vcvt.s32.f32 %v103
    %v105 = vadd.f32 %v98, %v104
    %106 = vset.pattern.permute.xlu0 2
    %107 = vperm.xlu0 %106, %v91
    %v108 = vpop.permute.xlu0 %107
    %vm109 = vcmp.eq.s32.totalorder %v90, %v108
    %v110 = vsel %vm109, 1, 0
    %v111 = vcvt.s32.f32 %v110
    %v112 = vadd.f32 %v105, %v111
    %113 = vset.pattern.permute.xlu0 3
    %114 = vperm.xlu0 %113, %v91
    %v115 = vpop.permute.xlu0 %114
    %vm116 = vcmp.eq.s32.totalorder %v90, %v115
    %v117 = vsel %vm116, 1, 0
    %v118 = vcvt.s32.f32 %v117
    %v119 = vadd.f32 %v112, %v118
    %v120 = vpack.c.bf16 %v119, %v119
    %v121 = vld [vmem:[#allocation2] sm:$0xf]
    %v122 = vld [vmem:[#allocation2 + $0x4] sm:$0xf]
    %v123 = vld [vmem:[#allocation2 + $0x8] sm:$0xf]
    %v124 = vld [vmem:[#allocation2 + $0xc] sm:$0xf]
    %v125 = vld [vmem:[#allocation2 + $0x10] sm:$0xf]
    %v126 = vld [vmem:[#allocation2 + $0x14] sm:$0xf]
    %v127 = vld [vmem:[#allocation2 + $0x18] sm:$0xf]
    %v128 = vld [vmem:[#allocation2 + $0x1c] sm:$0xf]
    %v129 = vld [vmem:[#allocation2 + $0x20] sm:$0xf]
    %v130 = vld [vmem:[#allocation2 + $0x24] sm:$0xf]
    %v131 = vld [vmem:[#allocation2 + $0x28] sm:$0xf]
    %v132 = vld [vmem:[#allocation2 + $0x2c] sm:$0xf]
    %v133 = vld [vmem:[#allocation2 + $0x30] sm:$0xf]
    %v134 = vld [vmem:[#allocation2 + $0x34] sm:$0xf]
    %v135 = vld [vmem:[#allocation2 + $0x38] sm:$0xf]
    %v136 = vld [vmem:[#allocation2 + $0x3c] sm:$0xf]
    %v137 = vld [vmem:[%s2] sm:$0x1]
    %v139 = vlaneseq
    %v140 = vshrl.u32 %v139, 7
    %v141 = vsub.s32 0, %v140
    %v142 = vrot.slane %v137, %v141
    %v160 = vunpack.c.l.b16 %v121
    %v161 = vunpack.c.l.b16 %v122
    %v162 = vunpack.c.l.b16 %v123
    %v163 = vunpack.c.l.b16 %v124
    %v164 = vunpack.c.l.b16 %v125
    %v165 = vunpack.c.l.b16 %v126
    %v166 = vunpack.c.l.b16 %v127
    %v167 = vunpack.c.l.b16 %v128
    %v168 = vunpack.c.l.b16 %v129
    %v169 = vunpack.c.l.b16 %v130
    %v170 = vunpack.c.l.b16 %v131
    %v171 = vunpack.c.l.b16 %v132
    %v172 = vunpack.c.l.b16 %v133
    %v173 = vunpack.c.l.b16 %v134
    %v174 = vunpack.c.l.b16 %v135
    %v175 = vunpack.c.l.b16 %v136
    %v176 = vpack.c.b16 %v161, %v160
    %v177 = vpack.c.b16 %v163, %v162
    %v178 = vpack.c.b16 %v165, %v164
    %v179 = vpack.c.b16 %v167, %v166
    %v180 = vpack.c.b16 %v169, %v168
    %v181 = vpack.c.b16 %v171, %v170
    %v182 = vpack.c.b16 %v173, %v172
    %v183 = vpack.c.b16 %v175, %v174
    %192 = vmatprep.subr.bf16.mxu0 0
    %193 = vmatpush1.bf16.msra.mxu0 %v183
    %194 = vmatprep.subr.bf16.mxu0 0
    %195 = vmatpush1.bf16.msra.mxu0 %v182
    %196 = vmatprep.subr.bf16.mxu0 0
    %197 = vmatpush1.bf16.msra.mxu0 %v181
    %198 = vmatprep.subr.bf16.mxu0 0
    %199 = vmatpush1.bf16.msra.mxu0 %v180
    %200 = vmatprep.subr.bf16.mxu0 0
    %201 = vmatpush1.bf16.msra.mxu0 %v179
    %202 = vmatprep.subr.bf16.mxu0 0
    %203 = vmatpush1.bf16.msra.mxu0 %v178
    %204 = vmatprep.subr.bf16.mxu0 0
    %205 = vmatpush1.bf16.msra.mxu0 %v177
    %206 = vmatprep.subr.bf16.mxu0 0
    %207 = vmatpush1.bf16.msra.mxu0 %v176
    %208 = vmatprep.subr.bf16.mxu0 0
    %209 = vmatpush2.bf16.msra.mxu0 0
    %210 = vmatprep.subr.bf16.mxu0 0
    %211 = vmatpush2.bf16.msra.mxu0 0
    %212 = vmatprep.subr.bf16.mxu0 0
    %213 = vmatpush2.bf16.msra.mxu0 0
    %214 = vmatprep.subr.bf16.mxu0 0
    %215 = vmatpush2.bf16.msra.mxu0 0
    %216 = vmatprep.subr.bf16.mxu0 0
    %217 = vmatpush2.bf16.msra.mxu0 0
    %218 = vmatprep.subr.bf16.mxu0 0
    %219 = vmatpush2.bf16.msra.mxu0 0
    %220 = vmatprep.subr.bf16.mxu0 0
    %221 = vmatpush2.bf16.msra.mxu0 0
    %222 = vmatprep.subr.bf16.mxu0 0
    %223 = vmatpush2.bf16.msra.mxu0 0
    %224 = vmatprep.mubr.bf16.mxu0 0
    %225 = vmatmul.mubr.bf16.gmra.mxu0 %v120
    %v226 = vpop.f32.mrf.mxu0
    %v227 = vadd.f32 %v142, %v226
    %v228 = vpop.f32.mrf.mxu0
    %v229 = vpop.f32.mrf.mxu0
    %v230 = vpop.f32.mrf.mxu0
    %231 = vdwg.mxu0
    %v232 = vmax.f32 %v227, 0.0
    %v233 = vpack.c.bf16 %v232, %v232
    %v234 = vld [vmem:[#allocation5] sm:$0xf]
    %v235 = vld [vmem:[#allocation5 + $0x4] sm:$0xf]
    %v236 = vld [vmem:[#allocation5 + $0x8] sm:$0xf]
    %v237 = vld [vmem:[#allocation5 + $0xc] sm:$0xf]
    %v238 = vld [vmem:[#allocation5 + $0x10] sm:$0xf]
    %v239 = vld [vmem:[#allocation5 + $0x14] sm:$0xf]
    %v240 = vld [vmem:[#allocation5 + $0x18] sm:$0xf]
    %v241 = vld [vmem:[#allocation5 + $0x1c] sm:$0xf]
    %v242 = vld [vmem:[#allocation5 + $0x20] sm:$0xf]
    %v243 = vld [vmem:[#allocation5 + $0x24] sm:$0xf]
    %v244 = vld [vmem:[#allocation5 + $0x28] sm:$0xf]
    %v245 = vld [vmem:[#allocation5 + $0x2c] sm:$0xf]
    %v246 = vld [vmem:[#allocation5 + $0x30] sm:$0xf]
    %v247 = vld [vmem:[#allocation5 + $0x34] sm:$0xf]
    %v248 = vld [vmem:[#allocation5 + $0x38] sm:$0xf]
    %v249 = vld [vmem:[#allocation5 + $0x3c] sm:$0xf]
    %v250 = vld [vmem:[%s4] sm:$0x1]
    %v252 = vlaneseq
    %v253 = vshrl.u32 %v252, 7
    %v254 = vsub.s32 0, %v253
    %v255 = vrot.slane %v250, %v254
    %v273 = vunpack.c.l.b16 %v234
    %v274 = vunpack.c.l.b16 %v235
    %v275 = vunpack.c.l.b16 %v236
    %v276 = vunpack.c.l.b16 %v237
    %v277 = vunpack.c.l.b16 %v238
    %v278 = vunpack.c.l.b16 %v239
    %v279 = vunpack.c.l.b16 %v240
    %v280 = vunpack.c.l.b16 %v241
    %v281 = vunpack.c.l.b16 %v242
    %v282 = vunpack.c.l.b16 %v243
    %v283 = vunpack.c.l.b16 %v244
    %v284 = vunpack.c.l.b16 %v245
    %v285 = vunpack.c.l.b16 %v246
    %v286 = vunpack.c.l.b16 %v247
    %v287 = vunpack.c.l.b16 %v248
    %v288 = vunpack.c.l.b16 %v249
    %v289 = vpack.c.b16 %v274, %v273
    %v290 = vpack.c.b16 %v276, %v275
    %v291 = vpack.c.b16 %v278, %v277
    %v292 = vpack.c.b16 %v280, %v279
    %v293 = vpack.c.b16 %v282, %v281
    %v294 = vpack.c.b16 %v284, %v283
    %v295 = vpack.c.b16 %v286, %v285
    %v296 = vpack.c.b16 %v288, %v287
    %305 = vmatprep.subr.bf16.mxu0 0
    %306 = vmatpush1.bf16.msra.mxu0 %v296
    %307 = vmatprep.subr.bf16.mxu0 0
    %308 = vmatpush1.bf16.msra.mxu0 %v295
    %309 = vmatprep.subr.bf16.mxu0 0
    %310 = vmatpush1.bf16.msra.mxu0 %v294
    %311 = vmatprep.subr.bf16.mxu0 0
    %312 = vmatpush1.bf16.msra.mxu0 %v293
    %313 = vmatprep.subr.bf16.mxu0 0
    %314 = vmatpush1.bf16.msra.mxu0 %v292
    %315 = vmatprep.subr.bf16.mxu0 0
    %316 = vmatpush1.bf16.msra.mxu0 %v291
    %317 = vmatprep.subr.bf16.mxu0 0
    %318 = vmatpush1.bf16.msra.mxu0 %v290
    %319 = vmatprep.subr.bf16.mxu0 0
    %320 = vmatpush1.bf16.msra.mxu0 %v289
    %321 = vmatprep.subr.bf16.mxu0 0
    %322 = vmatpush2.bf16.msra.mxu0 0
    %323 = vmatprep.subr.bf16.mxu0 0
    %324 = vmatpush2.bf16.msra.mxu0 0
    %325 = vmatprep.subr.bf16.mxu0 0
    %326 = vmatpush2.bf16.msra.mxu0 0
    %327 = vmatprep.subr.bf16.mxu0 0
    %328 = vmatpush2.bf16.msra.mxu0 0
    %329 = vmatprep.subr.bf16.mxu0 0
    %330 = vmatpush2.bf16.msra.mxu0 0
    %331 = vmatprep.subr.bf16.mxu0 0
    %332 = vmatpush2.bf16.msra.mxu0 0
    %333 = vmatprep.subr.bf16.mxu0 0
    %334 = vmatpush2.bf16.msra.mxu0 0
    %335 = vmatprep.subr.bf16.mxu0 0
    %336 = vmatpush2.bf16.msra.mxu0 0
    %337 = vmatprep.mubr.bf16.mxu0 0
    %338 = vmatmul.mubr.bf16.gmra.mxu0 %v233
    %v339 = vpop.f32.mrf.mxu0
    %v340 = vadd.f32 %v255, %v339
    %v341 = vpop.f32.mrf.mxu0
    %v342 = vpop.f32.mrf.mxu0
    %v343 = vpop.f32.mrf.mxu0
    %344 = vdwg.mxu0
    %v345 = vmax.f32 %v340, 0.0
    %v346 = vpack.c.bf16 %v345, %v345
    %v347 = vld [vmem:[#allocation7] sm:$0xf]
    %v348 = vld [vmem:[#allocation7 + $0x4] sm:$0xf]
    %v349 = vld [vmem:[#allocation7 + $0x8] sm:$0xf]
    %v350 = vld [vmem:[#allocation7 + $0xc] sm:$0xf]
    %v351 = vld [vmem:[#allocation7 + $0x10] sm:$0xf]
    %v352 = vld [vmem:[#allocation7 + $0x14] sm:$0xf]
    %v353 = vld [vmem:[#allocation7 + $0x18] sm:$0xf]
    %v354 = vld [vmem:[#allocation7 + $0x1c] sm:$0xf]
    %v355 = vld [vmem:[#allocation7 + $0x20] sm:$0xf]
    %v356 = vld [vmem:[#allocation7 + $0x24] sm:$0xf]
    %v357 = vld [vmem:[#allocation7 + $0x28] sm:$0xf]
    %v358 = vld [vmem:[#allocation7 + $0x2c] sm:$0xf]
    %v359 = vld [vmem:[#allocation7 + $0x30] sm:$0xf]
    %v360 = vld [vmem:[#allocation7 + $0x34] sm:$0xf]
    %v361 = vld [vmem:[#allocation7 + $0x38] sm:$0xf]
    %v362 = vld [vmem:[#allocation7 + $0x3c] sm:$0xf]
    %v363 = vld [vmem:[%s6] sm:$0x1]
    %v365 = vlaneseq
    %v366 = vshrl.u32 %v365, 7
    %v367 = vsub.s32 0, %v366
    %v368 = vrot.slane %v363, %v367
    %v386 = vunpack.c.l.b16 %v347
    %v387 = vunpack.c.l.b16 %v348
    %v388 = vunpack.c.l.b16 %v349
    %v389 = vunpack.c.l.b16 %v350
    %v390 = vunpack.c.l.b16 %v351
    %v391 = vunpack.c.l.b16 %v352
    %v392 = vunpack.c.l.b16 %v353
    %v393 = vunpack.c.l.b16 %v354
    %v394 = vunpack.c.l.b16 %v355
    %v395 = vunpack.c.l.b16 %v356
    %v396 = vunpack.c.l.b16 %v357
    %v397 = vunpack.c.l.b16 %v358
    %v398 = vunpack.c.l.b16 %v359
    %v399 = vunpack.c.l.b16 %v360
    %v400 = vunpack.c.l.b16 %v361
    %v401 = vunpack.c.l.b16 %v362
    %v402 = vpack.c.b16 %v387, %v386
    %v403 = vpack.c.b16 %v389, %v388
    %v404 = vpack.c.b16 %v391, %v390
    %v405 = vpack.c.b16 %v393, %v392
    %v406 = vpack.c.b16 %v395, %v394
    %v407 = vpack.c.b16 %v397, %v396
    %v408 = vpack.c.b16 %v399, %v398
    %v409 = vpack.c.b16 %v401, %v400
    %418 = vmatprep.subr.bf16.mxu0 0
    %419 = vmatpush1.bf16.msra.mxu0 %v409
    %420 = vmatprep.subr.bf16.mxu0 0
    %421 = vmatpush1.bf16.msra.mxu0 %v408
    %422 = vmatprep.subr.bf16.mxu0 0
    %423 = vmatpush1.bf16.msra.mxu0 %v407
    %424 = vmatprep.subr.bf16.mxu0 0
    %425 = vmatpush1.bf16.msra.mxu0 %v406
    %426 = vmatprep.subr.bf16.mxu0 0
    %427 = vmatpush1.bf16.msra.mxu0 %v405
    %428 = vmatprep.subr.bf16.mxu0 0
    %429 = vmatpush1.bf16.msra.mxu0 %v404
    %430 = vmatprep.subr.bf16.mxu0 0
    %431 = vmatpush1.bf16.msra.mxu0 %v403
    %432 = vmatprep.subr.bf16.mxu0 0
    %433 = vmatpush1.bf16.msra.mxu0 %v402
    %434 = vmatprep.subr.bf16.mxu0 0
    %435 = vmatpush2.bf16.msra.mxu0 0
    %436 = vmatprep.subr.bf16.mxu0 0
    %437 = vmatpush2.bf16.msra.mxu0 0
    %438 = vmatprep.subr.bf16.mxu0 0
    %439 = vmatpush2.bf16.msra.mxu0 0
    %440 = vmatprep.subr.bf16.mxu0 0
    %441 = vmatpush2.bf16.msra.mxu0 0
    %442 = vmatprep.subr.bf16.mxu0 0
    %443 = vmatpush2.bf16.msra.mxu0 0
    %444 = vmatprep.subr.bf16.mxu0 0
    %445 = vmatpush2.bf16.msra.mxu0 0
    %446 = vmatprep.subr.bf16.mxu0 0
    %447 = vmatpush2.bf16.msra.mxu0 0
    %448 = vmatprep.subr.bf16.mxu0 0
    %449 = vmatpush2.bf16.msra.mxu0 0
    %450 = vmatprep.mubr.bf16.mxu0 0
    %451 = vmatmul.mubr.bf16.gmra.mxu0 %v346
    %v452 = vpop.f32.mrf.mxu0
    %v453 = vadd.f32 %v368, %v452
    %v454 = vpop.f32.mrf.mxu0
    %v455 = vpop.f32.mrf.mxu0
    %v456 = vpop.f32.mrf.mxu0
    %457 = vdwg.mxu0
    %v458 = vmax.f32 %v453, 0.0
    %v459 = vpack.c.bf16 %v458, %v458
    %v460 = vld [vmem:[#allocation8] sm:$0xf]
    %v461 = vld [vmem:[#allocation8 + $0x4] sm:$0xf]
    %v462 = vld [vmem:[#allocation8 + $0x8] sm:$0xf]
    %v463 = vld [vmem:[#allocation8 + $0xc] sm:$0xf]
    %v464 = vld [vmem:[#allocation8 + $0x10] sm:$0xf]
    %v465 = vld [vmem:[#allocation8 + $0x14] sm:$0xf]
    %v466 = vld [vmem:[#allocation8 + $0x18] sm:$0xf]
    %v467 = vld [vmem:[#allocation8 + $0x1c] sm:$0xf]
    %v468 = vld [vmem:[#allocation8 + $0x20] sm:$0xf]
    %v469 = vld [vmem:[#allocation8 + $0x24] sm:$0xf]
    %v470 = vld [vmem:[#allocation8 + $0x28] sm:$0xf]
    %v471 = vld [vmem:[#allocation8 + $0x2c] sm:$0xf]
    %v472 = vld [vmem:[#allocation8 + $0x30] sm:$0xf]
    %v473 = vld [vmem:[#allocation8 + $0x34] sm:$0xf]
    %v474 = vld [vmem:[#allocation8 + $0x38] sm:$0xf]
    %v475 = vld [vmem:[#allocation8 + $0x3c] sm:$0xf]
    %v476 = vld [vmem:[%s8] sm:$0x1]
    %v478 = vlaneseq
    %v479 = vshrl.u32 %v478, 7
    %v480 = vsub.s32 0, %v479
    %v481 = vrot.slane %v476, %v480
    %v499 = vunpack.c.l.b16 %v460
    %v500 = vunpack.c.l.b16 %v461
    %v501 = vunpack.c.l.b16 %v462
    %v502 = vunpack.c.l.b16 %v463
    %v503 = vunpack.c.l.b16 %v464
    %v504 = vunpack.c.l.b16 %v465
    %v505 = vunpack.c.l.b16 %v466
    %v506 = vunpack.c.l.b16 %v467
    %v507 = vunpack.c.l.b16 %v468
    %v508 = vunpack.c.l.b16 %v469
    %v509 = vunpack.c.l.b16 %v470
    %v510 = vunpack.c.l.b16 %v471
    %v511 = vunpack.c.l.b16 %v472
    %v512 = vunpack.c.l.b16 %v473
    %v513 = vunpack.c.l.b16 %v474
    %v514 = vunpack.c.l.b16 %v475
    %v515 = vpack.c.b16 %v500, %v499
    %v516 = vpack.c.b16 %v502, %v501
    %v517 = vpack.c.b16 %v504, %v503
    %v518 = vpack.c.b16 %v506, %v505
    %v519 = vpack.c.b16 %v508, %v507
    %v520 = vpack.c.b16 %v510, %v509
    %v521 = vpack.c.b16 %v512, %v511
    %v522 = vpack.c.b16 %v514, %v513
    %531 = vmatprep.subr.bf16.mxu0 0
    %532 = vmatpush1.bf16.msra.mxu0 %v522
    %533 = vmatprep.subr.bf16.mxu0 0
    %534 = vmatpush1.bf16.msra.mxu0 %v521
    %535 = vmatprep.subr.bf16.mxu0 0
    %536 = vmatpush1.bf16.msra.mxu0 %v520
    %537 = vmatprep.subr.bf16.mxu0 0
    %538 = vmatpush1.bf16.msra.mxu0 %v519
    %539 = vmatprep.subr.bf16.mxu0 0
    %540 = vmatpush1.bf16.msra.mxu0 %v518
    %541 = vmatprep.subr.bf16.mxu0 0
    %542 = vmatpush1.bf16.msra.mxu0 %v517
    %543 = vmatprep.subr.bf16.mxu0 0
    %544 = vmatpush1.bf16.msra.mxu0 %v516
    %545 = vmatprep.subr.bf16.mxu0 0
    %546 = vmatpush1.bf16.msra.mxu0 %v515
    %547 = vmatprep.subr.bf16.mxu0 0
    %548 = vmatpush2.bf16.msra.mxu0 0
    %549 = vmatprep.subr.bf16.mxu0 0
    %550 = vmatpush2.bf16.msra.mxu0 0
    %551 = vmatprep.subr.bf16.mxu0 0
    %552 = vmatpush2.bf16.msra.mxu0 0
    %553 = vmatprep.subr.bf16.mxu0 0
    %554 = vmatpush2.bf16.msra.mxu0 0
    %555 = vmatprep.subr.bf16.mxu0 0
    %556 = vmatpush2.bf16.msra.mxu0 0
    %557 = vmatprep.subr.bf16.mxu0 0
    %558 = vmatpush2.bf16.msra.mxu0 0
    %559 = vmatprep.subr.bf16.mxu0 0
    %560 = vmatpush2.bf16.msra.mxu0 0
    %561 = vmatprep.subr.bf16.mxu0 0
    %562 = vmatpush2.bf16.msra.mxu0 0
    %563 = vmatprep.mubr.bf16.mxu0 0
    %564 = vmatmul.mubr.bf16.gmra.mxu0 %v459
    %v565 = vpop.f32.mrf.mxu0
    %v566 = vadd.f32 %v481, %v565
    %v567 = vpop.f32.mrf.mxu0
    %v568 = vpop.f32.mrf.mxu0
    %v569 = vpop.f32.mrf.mxu0
    %570 = vdwg.mxu0
    %v571 = vxor.u32 %v566, 2147483648
    %v572 = vmul.f32 %v571, 1.442695
    %v573 = vpow.pop %v572
    %v574 = vadd.f32 %v573, 1.0
    %v575 = vrcp.pop %v574
    %v576 = vmul.f32 1.0, %v575
    %577 = vst [vmem:[#allocation10] sm:$0xff] %v576
    // Predicated region
    $region54: #{tpu_custom_call.1} parent=1 // pred_check
      _
    $region55: #{tpu_custom_call.1} parent=1 // pred_check_branch
      %579 = sbr.rel (0) target = $region57
    $region56: #{tpu_custom_call.1} parent=1 // pred_region
      %s581 = ssub.s32 128, 128
      %582 = vsyncadd [#allocation4], %s581
      %s584 = sshll.u32 [#allocation10], 4
      %s585 = int_to_ptr.vmem [resolvable:$true] %s584
      %587 = dma.vmem_to_hbm [thread:$0]  %s585, 128, %s9, [#allocation4]
    $region57: #{tpu_custom_call.1} parent=1 // pred_fallthru
      _
    // Predicated region
    $region58: #{tpu_custom_call.1} parent=1 // pred_check
      _
    $region59: #{tpu_custom_call.1} parent=1 // pred_check_branch
      %589 = sbr.rel (0) target = $region61
    $region60: #{tpu_custom_call.1} parent=1 // pred_region
      %590 = dma.done [#allocation4], 128
    $region61: #{tpu_custom_call.1} parent=1 // pred_fallthru
      _
    %591 = vsyncpa [#allocation3], 1
    %592 = vsyncpa [#allocation6], 1
    %593 = vsyncpa [#allocation9], 1
    %594 = vsyncpa [#allocation4], 1

</llo_original>
